<compile_context>
chip_gen: v6e
topology: v6e:2x2x1
jax: 0.10.0
libtpu: 0.0.40
codegen_flags: <defaults>
</compile_context>

<pallas_src>
import jax
import jax.numpy as jnp
from jax.experimental import pallas as pl
from jax.experimental.pallas import tpu as pltpu


def _lm_criterion_kernel(logits_ref, target_ref, mask_ref,
                         ce_out_ref, mask_out_ref,
                         acc_ce, acc_mask):
    """Accumulate per-token CE and mask sums over the reduction (inner) axis."""
    i = pl.program_id(1)

    @pl.when(i == 0)
    def _():
        acc_ce[...] = jnp.zeros_like(acc_ce)
        acc_mask[...] = jnp.zeros_like(acc_mask)

    logits = logits_ref[...].astype(jnp.float32)           # (TM, V) upcast on load
    tgt = target_ref[...]                                   # (TM, 1) int32
    msk = mask_ref[...].astype(jnp.float32)                 # (TM, 1)

    # Numerically stable CE on shifted logits only:
    #   ce = logsumexp(x) - x[tgt] = log(sum(exp(x - m))) - (x[tgt] - m)
    row_max = jnp.max(logits, axis=-1, keepdims=True)       # (TM, 1)
    shifted = logits - row_max                               # (TM, V)
    sum_exp = jnp.sum(jnp.exp(shifted), axis=-1, keepdims=True)
    vocab_ids = jax.lax.broadcasted_iota(jnp.int32, shifted.shape, 1)
    picked = jnp.sum(jnp.where(vocab_ids == tgt, shifted, 0.0),
                     axis=-1, keepdims=True)                 # (TM, 1)
    ce = jnp.log(sum_exp) - picked                           # per-token CE (TM, 1)

    acc_ce[...] = acc_ce[...] + ce
    acc_mask[...] = acc_mask[...] + msk

    @pl.when(i == pl.num_programs(1) - 1)
    def _():
        ce_out_ref[...] = jnp.broadcast_to(
            jnp.sum(acc_ce[...]).astype(jnp.float32), ce_out_ref.shape)
        mask_out_ref[...] = jnp.broadcast_to(
            jnp.sum(acc_mask[...]).astype(jnp.float32), mask_out_ref.shape)


def _choose_token_tile(nt, row_bytes, max_block_bytes, max_rows):
    """Largest multiple-of-8 divisor of nt whose (rows, V) logits block fits."""
    cap = max(1, min(max_rows, max_block_bytes // max(row_bytes, 1), nt))
    for cand in range(int(cap), 0, -1):
        if nt % cand == 0 and cand % 8 == 0:
            return cand
    # TODO(synk): pad the token axis for awkward N*T (e.g. prime / not a
    # multiple of 8); the full-extent fallback is always layout-legal but may
    # exceed the intended per-block VMEM budget for very large N*T.
    return nt


def language_model_criterion(logits, target, mask, *,
                             max_block_bytes=None, max_rows=2048):
    """logits: (N, T, V); target: (N, >=T) int; mask: (N, >=T) float/bool."""
    N, T, V = logits.shape
    # Glue (slicing / flattening) stays in plain JAX, mirroring the module.
    target = target[:, :T]
    mask = mask[:, :T]
    nt = N * T

    # Keep logits in their native dtype in HBM (no wrapper-side f32 cast pass).
    logits2d = logits.reshape(nt, V)
    target2d = target.reshape(nt, 1).astype(jnp.int32)
    mask2d = mask.reshape(nt, 1).astype(jnp.float32)

    itemsize = jnp.dtype(logits2d.dtype).itemsize
    row_bytes = V * itemsize

    # Per-chip VMEM budget (64 MiB/core on v7x, 128 MiB on v5e/v6e).
    try:
        vmem_cap = int(pltpu.get_tpu_info().vmem_capacity_bytes)
    except Exception:  # conservative fallback if the query is unavailable
        vmem_cap = 64 * 1024 * 1024
    if max_block_bytes is None:
        # Leave room for double-buffering + in-kernel f32 intermediates.
        max_block_bytes = min(8 * 1024 * 1024, vmem_cap // 16)
    vmem_limit = int(min(vmem_cap * 3 // 4, 112 * 1024 * 1024))

    tm = _choose_token_tile(nt, row_bytes, max_block_bytes, max_rows)
    n_blocks = nt // tm
    # Parallel token split: uses both TensorCores on v7x, harmless on v5e/v6e.
    n_splits = 2 if (n_blocks >= 2 and n_blocks % 2 == 0) else 1
    steps = n_blocks // n_splits

    def token_block(s, i, _steps=steps):
        return (s * _steps + i, 0)

    def split_block(s, i):
        return (s, 0, 0)

    ce_part, mask_part = pl.pallas_call(
        _lm_criterion_kernel,
        out_shape=(
            jax.ShapeDtypeStruct((n_splits, 8, 128), jnp.float32),
            jax.ShapeDtypeStruct((n_splits, 8, 128), jnp.float32),
        ),
        grid_spec=pltpu.PrefetchScalarGridSpec(
            num_scalar_prefetch=0,
            grid=(n_splits, steps),
            in_specs=[
                pl.BlockSpec((tm, V), token_block),
                pl.BlockSpec((tm, 1), token_block),
                pl.BlockSpec((tm, 1), token_block),
            ],
            out_specs=[
                pl.BlockSpec((1, 8, 128), split_block),
                pl.BlockSpec((1, 8, 128), split_block),
            ],
            scratch_shapes=[
                pltpu.VMEM((tm, 1), jnp.float32),   # per-row CE partial sums
                pltpu.VMEM((tm, 1), jnp.float32),   # per-row mask partial sums
            ],
        ),
        compiler_params=pltpu.CompilerParams(
            dimension_semantics=("parallel", "arbitrary"),
            vmem_limit_bytes=vmem_limit,
        ),
        cost_estimate=pl.CostEstimate(
            flops=6 * nt * V,
            transcendentals=nt * V,
            bytes_accessed=nt * V * itemsize + nt * 8 + n_splits * 2 * 8 * 128 * 4,
        ),
    )(logits2d, target2d, mask2d)

    ce_total = jnp.sum(ce_part[:, 0, 0])
    mask_total = jnp.sum(mask_part[:, 0, 0])
    mean_ce = ce_total / jnp.float32(nt)           # CrossEntropyLoss(reduction='mean')
    return mean_ce * mask_total / jnp.float32(N)   # sum(loss * mask) / batch_size


def _reference(logits, target, mask):
    """Pure-JAX reference with the exact PyTorch-module semantics."""
    N, T, V = logits.shape
    target = target[:, :T].reshape(-1)
    mask = mask[:, :T].reshape(-1).astype(jnp.float32)
    logp = jax.nn.log_softmax(logits.reshape(-1, V).astype(jnp.float32), axis=-1)
    ce = -jnp.take_along_axis(logp, target.reshape(-1, 1).astype(jnp.int32),
                              axis=-1)[:, 0]
    mean_ce = jnp.mean(ce)                        # CrossEntropyLoss(reduction='mean')
    return jnp.sum(mean_ce * mask) / N            # sum(loss * mask) / batch_size


if __name__ == "__main__":
    key = jax.random.PRNGKey(0)
    k1, k2, k3, k4, k5, k6 = jax.random.split(key, 6)

    # Small deterministic test: N=2, seq_len=8, vocab=128 (lane-aligned), f32.
    N, T, V = 2, 8, 128
    logits = jax.random.normal(k1, (N, T, V), dtype=jnp.float32)
    target = jax.random.randint(k2, (N, T), 0, V, dtype=jnp.int32)
    mask = (jax.random.uniform(k3, (N, T)) > 0.3).astype(jnp.float32)

    out = jax.block_until_ready(language_model_criterion(logits, target, mask))
    ref = jax.block_until_ready(_reference(logits, target, mask))
    assert jnp.allclose(out, ref, rtol=1e-5, atol=1e-5), (out, ref)

    # Larger test exercising the (parallel split x reduction steps) grid by
    # capping the block budget so tm=64, n_splits=2, steps=2.
    N2, T2, V2 = 4, 64, 256
    logits2 = jax.random.normal(k4, (N2, T2, V2), dtype=jnp.float32)
    target2 = jax.random.randint(k5, (N2, T2), 0, V2, dtype=jnp.int32)
    mask2 = (jax.random.uniform(k6, (N2, T2)) > 0.5).astype(jnp.float32)
    out2 = jax.block_until_ready(
        language_model_criterion(logits2, target2, mask2,
                                 max_block_bytes=64 * V2 * 4))
    ref2 = jax.block_until_ready(_reference(logits2, target2, mask2))
    assert jnp.allclose(out2, ref2, rtol=1e-5, atol=1e-5), (out2, ref2)

    print("KERNEL_OK")
</pallas_src>

<mosaic_0001>
module attributes {stable_mosaic.version = 11 : i64} {
  func.func @_lm_criterion_kernel(%arg0: i32, %arg1: i32, %arg2: memref<16x128xf32, #tpu.memory_space<vmem>>, %arg3: memref<16x1xi32, #tpu.memory_space<vmem>>, %arg4: memref<16x1xf32, #tpu.memory_space<vmem>>, %arg5: memref<1x8x128xf32, #tpu.memory_space<vmem>>, %arg6: memref<1x8x128xf32, #tpu.memory_space<vmem>>, %arg7: memref<16x1xf32, #tpu.memory_space<vmem>>, %arg8: memref<16x1xf32, #tpu.memory_space<vmem>>) attributes {dimension_semantics = [#tpu.dimension_semantics<parallel>, #tpu.dimension_semantics<arbitrary>], iteration_bounds = array<i64: 1, 1>, scalar_prefetch = 0 : i64, scratch_operands = 2 : i64, tpu.core_type = #tpu.core_type<tc>, window_params = [{transform_indices = @transform_0, window_bounds = array<i64: 16, 128>}, {transform_indices = @transform_1, window_bounds = array<i64: 16, 1>}, {transform_indices = @transform_2, window_bounds = array<i64: 16, 1>}, {transform_indices = @transform_3, window_bounds = array<i64: 1, 8, 128>}, {transform_indices = @transform_4, window_bounds = array<i64: 1, 8, 128>}]} {
    %c0_i32 = arith.constant 0 : i32
    %0 = arith.cmpi eq, %arg1, %c0_i32 : i32
    %1 = arith.extui %0 : i1 to i32
    %c0_i32_0 = arith.constant 0 : i32
    %2 = arith.cmpi ne, %1, %c0_i32_0 : i32
    scf.if %2 {
      %cst_19 = arith.constant 0.000000e+00 : f32
      %31 = vector.broadcast %cst_19 : f32 to vector<16x1xf32>
      %c0_20 = arith.constant 0 : index
      %c0_21 = arith.constant 0 : index
      %32 = vector.load %arg7[%c0_20, %c0_21] : memref<16x1xf32, #tpu.memory_space<vmem>>, vector<16x1xf32>
      tpu.vector_store %arg7[%c0_20, %c0_21], %31 {strides = array<i32>} : memref<16x1xf32, #tpu.memory_space<vmem>>, vector<16x1xf32>,
      %cst_22 = arith.constant 0.000000e+00 : f32
      %33 = vector.broadcast %cst_22 : f32 to vector<16x1xf32>
      %c0_23 = arith.constant 0 : index
      %c0_24 = arith.constant 0 : index
      %34 = vector.load %arg8[%c0_23, %c0_24] : memref<16x1xf32, #tpu.memory_space<vmem>>, vector<16x1xf32>
      tpu.vector_store %arg8[%c0_23, %c0_24], %33 {strides = array<i32>} : memref<16x1xf32, #tpu.memory_space<vmem>>, vector<16x1xf32>,
    } else {
    }
    %c0 = arith.constant 0 : index
    %c0_1 = arith.constant 0 : index
    %3 = vector.load %arg2[%c0, %c0_1] : memref<16x128xf32, #tpu.memory_space<vmem>>, vector<16x128xf32>
    %c0_2 = arith.constant 0 : index
    %c0_3 = arith.constant 0 : index
    %4 = vector.load %arg3[%c0_2, %c0_3] : memref<16x1xi32, #tpu.memory_space<vmem>>, vector<16x1xi32>
    %c0_4 = arith.constant 0 : index
    %c0_5 = arith.constant 0 : index
    %5 = vector.load %arg4[%c0_4, %c0_5] : memref<16x1xf32, #tpu.memory_space<vmem>>, vector<16x1xf32>
    %cst = arith.constant dense<0xFF800000> : vector<16xf32>
    %6 = vector.multi_reduction <maximumf>, %3, %cst [1] : vector<16x128xf32> to vector<16xf32>
    %7 = vector.shape_cast %6 : vector<16xf32> to vector<16x1xf32>
    %8 = vector.broadcast %7 : vector<16x1xf32> to vector<16x128xf32>
    %9 = arith.subf %3, %8 : vector<16x128xf32>
    %10 = math.exp %9 : vector<16x128xf32>
    %cst_6 = arith.constant dense<0.000000e+00> : vector<16xf32>
    %11 = vector.multi_reduction <add>, %10, %cst_6 [1] : vector<16x128xf32> to vector<16xf32>
    %12 = vector.shape_cast %11 : vector<16xf32> to vector<16x1xf32>
    %13 = tpu.iota {dimensions = array<i32: 1>} : vector<16x128xi32>
    %14 = vector.broadcast %4 : vector<16x1xi32> to vector<16x128xi32>
    %15 = arith.cmpi eq, %13, %14 : vector<16x128xi32>
    %cst_7 = arith.constant 0.000000e+00 : f32
    %16 = vector.broadcast %cst_7 : f32 to vector<16x128xf32>
    %17 = arith.select %15, %9, %16 : vector<16x128xi1>, vector<16x128xf32>
    %cst_8 = arith.constant dense<0.000000e+00> : vector<16xf32>
    %18 = vector.multi_reduction <add>, %17, %cst_8 [1] : vector<16x128xf32> to vector<16xf32>
    %19 = vector.shape_cast %18 : vector<16xf32> to vector<16x1xf32>
    %20 = math.log %12 : vector<16x1xf32>
    %21 = arith.subf %20, %19 : vector<16x1xf32>
    %c0_9 = arith.constant 0 : index
    %c0_10 = arith.constant 0 : index
    %22 = vector.load %arg7[%c0_9, %c0_10] : memref<16x1xf32, #tpu.memory_space<vmem>>, vector<16x1xf32>
    %23 = arith.addf %22, %21 : vector<16x1xf32>
    %c0_11 = arith.constant 0 : index
    %c0_12 = arith.constant 0 : index
    %24 = vector.load %arg7[%c0_11, %c0_12] : memref<16x1xf32, #tpu.memory_space<vmem>>, vector<16x1xf32>
    tpu.vector_store %arg7[%c0_11, %c0_12], %23 {strides = array<i32>} : memref<16x1xf32, #tpu.memory_space<vmem>>, vector<16x1xf32>,
    %c0_13 = arith.constant 0 : index
    %c0_14 = arith.constant 0 : index
    %25 = vector.load %arg8[%c0_13, %c0_14] : memref<16x1xf32, #tpu.memory_space<vmem>>, vector<16x1xf32>
    %26 = arith.addf %25, %5 : vector<16x1xf32>
    %c0_15 = arith.constant 0 : index
    %c0_16 = arith.constant 0 : index
    %27 = vector.load %arg8[%c0_15, %c0_16] : memref<16x1xf32, #tpu.memory_space<vmem>>, vector<16x1xf32>
    tpu.vector_store %arg8[%c0_15, %c0_16], %26 {strides = array<i32>} : memref<16x1xf32, #tpu.memory_space<vmem>>, vector<16x1xf32>,
    %c0_i32_17 = arith.constant 0 : i32
    %28 = arith.cmpi eq, %arg1, %c0_i32_17 : i32
    %29 = arith.extui %28 : i1 to i32
    %c0_i32_18 = arith.constant 0 : i32
    %30 = arith.cmpi ne, %29, %c0_i32_18 : i32
    scf.if %30 {
      %c0_19 = arith.constant 0 : index
      %c0_20 = arith.constant 0 : index
      %31 = vector.load %arg7[%c0_19, %c0_20] : memref<16x1xf32, #tpu.memory_space<vmem>>, vector<16x1xf32>
      %32 = vector.shape_cast %31 : vector<16x1xf32> to vector<1x16x1xf32>
      %cst_21 = arith.constant dense<0.000000e+00> : vector<1xf32>
      %33 = vector.multi_reduction <add>, %32, %cst_21 [1, 2] : vector<1x16x1xf32> to vector<1xf32>
      %34 = vector.shape_cast %33 : vector<1xf32> to vector<1x1x1xf32>
      %35 = vector.extract %34[0, 0, 0] : f32 from vector<1x1x1xf32>
      %36 = vector.broadcast %35 : f32 to vector<1x8x128xf32>
      %c0_22 = arith.constant 0 : index
      %c0_23 = arith.constant 0 : index
      %c0_24 = arith.constant 0 : index
      %37 = vector.load %arg5[%c0_22, %c0_23, %c0_24] : memref<1x8x128xf32, #tpu.memory_space<vmem>>, vector<1x8x128xf32>
      tpu.vector_store %arg5[%c0_22, %c0_23, %c0_24], %36 {strides = array<i32>} : memref<1x8x128xf32, #tpu.memory_space<vmem>>, vector<1x8x128xf32>,
      %c0_25 = arith.constant 0 : index
      %c0_26 = arith.constant 0 : index
      %38 = vector.load %arg8[%c0_25, %c0_26] : memref<16x1xf32, #tpu.memory_space<vmem>>, vector<16x1xf32>
      %39 = vector.shape_cast %38 : vector<16x1xf32> to vector<1x16x1xf32>
      %cst_27 = arith.constant dense<0.000000e+00> : vector<1xf32>
      %40 = vector.multi_reduction <add>, %39, %cst_27 [1, 2] : vector<1x16x1xf32> to vector<1xf32>
      %41 = vector.shape_cast %40 : vector<1xf32> to vector<1x1x1xf32>
      %42 = vector.extract %41[0, 0, 0] : f32 from vector<1x1x1xf32>
      %43 = vector.broadcast %42 : f32 to vector<1x8x128xf32>
      %c0_28 = arith.constant 0 : index
      %c0_29 = arith.constant 0 : index
      %c0_30 = arith.constant 0 : index
      %44 = vector.load %arg6[%c0_28, %c0_29, %c0_30] : memref<1x8x128xf32, #tpu.memory_space<vmem>>, vector<1x8x128xf32>
      tpu.vector_store %arg6[%c0_28, %c0_29, %c0_30], %43 {strides = array<i32>} : memref<1x8x128xf32, #tpu.memory_space<vmem>>, vector<1x8x128xf32>,
    } else {
    }
    return
  }
  func.func @transform_0(%arg0: i32, %arg1: i32) -> (i32, i32) {
    %c1_i32 = arith.constant 1 : i32
    %0 = arith.muli %arg0, %c1_i32 : i32
    %1 = arith.addi %0, %arg1 : i32
    %c0_i32 = arith.constant 0 : i32
    %c0_i32_0 = arith.constant 0 : i32
    return %1, %c0_i32 : i32, i32
  }
  func.func @transform_1(%arg0: i32, %arg1: i32) -> (i32, i32) {
    %c1_i32 = arith.constant 1 : i32
    %0 = arith.muli %arg0, %c1_i32 : i32
    %1 = arith.addi %0, %arg1 : i32
    %c0_i32 = arith.constant 0 : i32
    %c0_i32_0 = arith.constant 0 : i32
    return %1, %c0_i32 : i32, i32
  }
  func.func @transform_2(%arg0: i32, %arg1: i32) -> (i32, i32) {
    %c1_i32 = arith.constant 1 : i32
    %0 = arith.muli %arg0, %c1_i32 : i32
    %1 = arith.addi %0, %arg1 : i32
    %c0_i32 = arith.constant 0 : i32
    %c0_i32_0 = arith.constant 0 : i32
    return %1, %c0_i32 : i32, i32
  }
  func.func @transform_3(%arg0: i32, %arg1: i32) -> (i32, i32, i32) {
    %c0_i32 = arith.constant 0 : i32
    %c0_i32_0 = arith.constant 0 : i32
    %c0_i32_1 = arith.constant 0 : i32
    return %arg0, %c0_i32, %c0_i32_0 : i32, i32, i32
  }
  func.func @transform_4(%arg0: i32, %arg1: i32) -> (i32, i32, i32) {
    %c0_i32 = arith.constant 0 : i32
    %c0_i32_0 = arith.constant 0 : i32
    %c0_i32_1 = arith.constant 0 : i32
    return %arg0, %c0_i32, %c0_i32_0 : i32, i32, i32
  }
}

</mosaic_0001>

<llo_original>
// kernel: tpu_custom_call.1
$region0: #{tpu_custom_call.1}
  #allocation0 [shape = 'u32[]', space=smem, size = 0x4, offset = 0x4, fixed_abs, tag = 'smem constant byte address 0x4 - core index']
  #allocation1 [shape = 'u32[144,128]{1,0:T(1,128)}', space=vmem, size = 0x12000, scoped, tag = 'internal scratch']
  #allocation2 [shape = 'f32[16,1]{1,0:T(8,128)}', space=vmem, size = 0x2000, scoped, tag = 'scratch operand']
  #allocation3 [shape = 'f32[16,1]{1,0:T(8,128)}', space=vmem, size = 0x2000, scoped, tag = 'scratch operand']
  %s0 = inlined_call_operand.vmem [shape: f32[16,128], index: 0, kind: input, shape index: {}]
  %s1 = inlined_call_operand.vmem [shape: s32[16,1], index: 1, kind: input, shape index: {}]
  %s2 = inlined_call_operand.vmem [shape: f32[16,1], index: 2, kind: input, shape index: {}]
  %s3 = inlined_call_operand.hbm [shape: f32[1,8,128], index: 3, kind: output, shape index: {0}]
  %s4 = inlined_call_operand.hbm [shape: f32[1,8,128], index: 4, kind: output, shape index: {1}]
  %5 = xla_tuple %s3, %s4
  %s6 = sld [smem:[#allocation0]]
  $region38: #{tpu_custom_call.1} parent=0
    _
  %s8 = ssub.s32 1, %s6
  %s9 = scalar_select 0, %s8, %s6
  $region1: #{tpu_custom_call.1} parent=0
    #allocation4 [shape = 'u8[4096]{0}', space=vmem, size = 0x1000, scoped, tag = 'output window, operand 0, single buffered']
    #allocation5 [shape = 's32[1]{0}', space=sflag, size = 0x4, scoped, tag = 'scoped memory for tpu_custom_call.1']
    #allocation6 [shape = 'u8[4096]{0}', space=vmem, size = 0x1000, scoped, tag = 'output window, operand 1, single buffered']
    #allocation7 [shape = 's32[1]{0}', space=sflag, size = 0x4, scoped, tag = 'scoped memory for tpu_custom_call.1']
    %10 = vsyncpa [#allocation5], 0
    %11 = vsyncpa [#allocation7], 0
    // Predicated region
    $region2: #{tpu_custom_call.1} parent=1 // pred_check
      _
    $region3: #{tpu_custom_call.1} parent=1 // pred_check_branch
      %13 = sbr.rel (0) target = $region5
    $region4: #{tpu_custom_call.1} parent=1 // pred_region
      %s14 = sadd.s32 0, 0
      %s15 = smul.u32 2, %s14
      %p16 = scmp.lt.s32.totalorder %s15, 1
      %s17 = scalar_select %p16, %s15, 1
      %s18 = smul.addr %s17, 8
      %s19 = scalar_lea.vmem %s0, %s18
      %s20 = sadd.s32 0, 0
      %s21 = smul.u32 2, %s20
    $region5: #{tpu_custom_call.1} parent=1 // pred_fallthru
      _
    // Predicated region
    $region6: #{tpu_custom_call.1} parent=1 // pred_check
      _
    $region7: #{tpu_custom_call.1} parent=1 // pred_check_branch
      %23 = sbr.rel (0) target = $region9
    $region8: #{tpu_custom_call.1} parent=1 // pred_region
      %s24 = sadd.s32 0, 0
      %s25 = smul.u32 2, %s24
      %p26 = scmp.lt.s32.totalorder %s25, 1
      %s27 = scalar_select %p26, %s25, 1
      %s28 = smul.addr %s27, 8
      %s29 = scalar_lea.vmem %s1, %s28
      %s30 = sadd.s32 0, 0
      %s31 = smul.u32 2, %s30
    $region9: #{tpu_custom_call.1} parent=1 // pred_fallthru
      _
    // Predicated region
    $region10: #{tpu_custom_call.1} parent=1 // pred_check
      _
    $region11: #{tpu_custom_call.1} parent=1 // pred_check_branch
      %33 = sbr.rel (0) target = $region13
    $region12: #{tpu_custom_call.1} parent=1 // pred_region
      %s34 = sadd.s32 0, 0
      %s35 = smul.u32 2, %s34
      %p36 = scmp.lt.s32.totalorder %s35, 1
      %s37 = scalar_select %p36, %s35, 1
      %s38 = smul.addr %s37, 8
      %s39 = scalar_lea.vmem %s2, %s38
      %s40 = sadd.s32 0, 0
      %s41 = smul.u32 2, %s40
    $region13: #{tpu_custom_call.1} parent=1 // pred_fallthru
      _
    %s42 = sadd.s32 0, 0
    %s43 = smul.u32 2, %s42
    %p44 = scmp.lt.s32.totalorder %s43, 1
    %s45 = scalar_select %p44, %s43, 1
    %s46 = smul.addr %s45, 8
    %s47 = scalar_lea.vmem %s0, %s46
    %s48 = sadd.s32 0, 0
    %s49 = smul.u32 2, %s48
    %p50 = scmp.lt.s32.totalorder %s49, 1
    %s51 = scalar_select %p50, %s49, 1
    %s52 = smul.addr %s51, 8
    %s53 = scalar_lea.vmem %s1, %s52
    %s54 = sadd.s32 0, 0
    %s55 = smul.u32 2, %s54
    %p56 = scmp.lt.s32.totalorder %s55, 1
    %s57 = scalar_select %p56, %s55, 1
    %s58 = smul.addr %s57, 8
    %s59 = scalar_lea.vmem %s2, %s58
    %s60 = sadd.s32 0, 0
    %s61 = smul.u32 2, %s60
    %p62 = scmp.lt.s32.totalorder %s61, 1
    %s63 = scalar_select %p62, %s61, 1
    %s64 = smul.addr %s63, 8
    %s65 = scalar_lea.vmem %s0, %s64
    %s66 = sadd.s32 0, 0
    %s67 = smul.u32 2, %s66
    %s68 = sadd.s32 0, 0
    %s69 = smul.u32 2, %s68
    %p70 = scmp.lt.s32.totalorder %s69, 1
    %s71 = scalar_select %p70, %s69, 1
    %s72 = smul.addr %s71, 8
    %s73 = scalar_lea.vmem %s1, %s72
    %s74 = sadd.s32 0, 0
    %s75 = smul.u32 2, %s74
    %s76 = sadd.s32 0, 0
    %s77 = smul.u32 2, %s76
    %p78 = scmp.lt.s32.totalorder %s77, 1
    %s79 = scalar_select %p78, %s77, 1
    %s80 = smul.addr %s79, 8
    %s81 = scalar_lea.vmem %s2, %s80
    %s82 = sadd.s32 0, 0
    %s83 = smul.u32 2, %s82
    %p84 = scmp.eq.s32.totalorder 0, 0
    // Predicated region
    $region14: #{tpu_custom_call.1} parent=1 // pred_check
      %p85 = pneg %p84
    $region15: #{tpu_custom_call.1} parent=1 // pred_check_branch
      %87 = sbr.rel (%p85) target = $region17
    $region16: #{tpu_custom_call.1} parent=1 // pred_region
      %vm88 = vcmask 7168
      %89 = vst.msk [vmem:[#allocation2] sm:$0xff] %vm88, 0.0
      %90 = vst.msk [vmem:[#allocation2 + $0x8] sm:$0xff] %vm88, 0.0
      %91 = vst.msk [vmem:[#allocation3] sm:$0xff] %vm88, 0.0
      %92 = vst.msk [vmem:[#allocation3 + $0x8] sm:$0xff] %vm88, 0.0
    $region17: #{tpu_custom_call.1} parent=1 // pred_fallthru
      _
    %v93 = vld [vmem:[%s65] sm:$0xff]
    %v94 = vld [vmem:[%s65 + $0x8] sm:$0xff]
    %v95 = vld [vmem:[%s73] sm:$0xff]
    %v96 = vld [vmem:[%s73 + $0x8] sm:$0xff]
    %v97 = vld [vmem:[%s81] sm:$0xff]
    %v98 = vld [vmem:[%s81 + $0x8] sm:$0xff]
    %99 = vmax.xlane.f32.xlu0 %v93
    %v100 = vpop.xlane.xlu0 %99
    %101 = vmax.xlane.f32.xlu0 %v94
    %v102 = vpop.xlane.xlu0 %101
    %v103 = vsub.f32 %v93, %v100
    %v104 = vsub.f32 %v94, %v102
    %v105 = vmul.f32 %v103, 1.442695
    %v106 = vpow.pop %v105
    %v107 = vmul.f32 %v104, 1.442695
    %v108 = vpow.pop %v107
    %109 = vadd.xlane.f32.xlu0 %v106
    %v110 = vpop.xlane.xlu0 %109
    %111 = vadd.xlane.f32.xlu0 %v108
    %v112 = vpop.xlane.xlu0 %111
    %v113 = vlaneseq
    %v114 = vand.u32 %v113, 127
    %115 = vset.pattern.permute.xlu0 0
    %116 = vperm.xlu0 %115, %v95
    %v117 = vpop.permute.xlu0 %116
    %118 = vset.pattern.permute.xlu0 0
    %119 = vperm.xlu0 %118, %v96
    %v120 = vpop.permute.xlu0 %119
    %vm121 = vcmp.eq.s32.totalorder %v114, %v117
    %vm122 = vcmp.eq.s32.totalorder %v114, %v120
    %v123 = vsel %vm121, %v103, 0.0
    %v124 = vsel %vm122, %v104, 0.0
    %125 = vadd.xlane.f32.xlu0 %v123
    %v126 = vpop.xlane.xlu0 %125
    %127 = vadd.xlane.f32.xlu0 %v124
    %v128 = vpop.xlane.xlu0 %127
    %v129 = vlog2.pop %v110
    %v130 = vmul.f32 %v129, 0.6931472
    %v131 = vlog2.pop %v112
    %v132 = vmul.f32 %v131, 0.6931472
    %v133 = vsub.f32 %v130, %v126
    %v134 = vsub.f32 %v132, %v128
    %v135 = vld [vmem:[#allocation2] sm:$0xff]
    %v136 = vld [vmem:[#allocation2 + $0x8] sm:$0xff]
    %v137 = vadd.f32 %v135, %v133
    %v138 = vadd.f32 %v136, %v134
    %vm139 = vcmask 7168
    %140 = vst.msk [vmem:[#allocation2] sm:$0xff] %vm139, %v137
    %141 = vst.msk [vmem:[#allocation2 + $0x8] sm:$0xff] %vm139, %v138
    %v142 = vld [vmem:[#allocation3] sm:$0xff]
    %v143 = vld [vmem:[#allocation3 + $0x8] sm:$0xff]
    %v144 = vadd.f32 %v142, %v97
    %v145 = vadd.f32 %v143, %v98
    %146 = vst.msk [vmem:[#allocation3] sm:$0xff] %vm139, %v144
    %147 = vst.msk [vmem:[#allocation3 + $0x8] sm:$0xff] %vm139, %v145
    // Predicated region
    $region18: #{tpu_custom_call.1} parent=1 // pred_check
      %p148 = pneg %p84
    $region19: #{tpu_custom_call.1} parent=1 // pred_check_branch
      %150 = sbr.rel (%p148) target = $region21
    $region20: #{tpu_custom_call.1} parent=1 // pred_region
      %v151 = vld [vmem:[#allocation2] sm:$0xff]
      %v152 = vld [vmem:[#allocation2 + $0x8] sm:$0xff]
      %v153 = vsel %vm139, %v151, 0.0
      %v154 = vsel %vm139, %v152, 0.0
      %v155 = vadd.f32 %v153, %v154
      %156 = vadd.xlane.f32.xlu0 %v155
      %v157 = vpop.xlane.xlu0 %156
      %v158 = vrot.slane %v157, 4
      %v159 = vadd.f32 %v157, %v158
      %v160 = vrot.slane %v159, 2
      %v161 = vadd.f32 %v159, %v160
      %v162 = vrot.slane %v161, 1
      %v163 = vadd.f32 %v161, %v162
      %s164 = vtos %v163
      %v165 = vstv %s164
      %166 = vst [vmem:[#allocation4] sm:$0xff] %v165
      %v167 = vld [vmem:[#allocation3] sm:$0xff]
      %v168 = vld [vmem:[#allocation3 + $0x8] sm:$0xff]
      %v169 = vsel %vm139, %v167, 0.0
      %v170 = vsel %vm139, %v168, 0.0
      %v171 = vadd.f32 %v169, %v170
      %172 = vadd.xlane.f32.xlu0 %v171
      %v173 = vpop.xlane.xlu0 %172
      %v174 = vrot.slane %v173, 4
      %v175 = vadd.f32 %v173, %v174
      %v176 = vrot.slane %v175, 2
      %v177 = vadd.f32 %v175, %v176
      %v178 = vrot.slane %v177, 1
      %v179 = vadd.f32 %v177, %v178
      %s180 = vtos %v179
      %v181 = vstv %s180
      %182 = vst [vmem:[#allocation6] sm:$0xff] %v181
    $region21: #{tpu_custom_call.1} parent=1 // pred_fallthru
      _
    // Predicated region
    $region22: #{tpu_custom_call.1} parent=1 // pred_check
      _
    $region23: #{tpu_custom_call.1} parent=1 // pred_check_branch
      %184 = sbr.rel (0) target = $region25
    $region24: #{tpu_custom_call.1} parent=1 // pred_region
      %s186 = ssub.s32 128, 128
      %187 = vsyncadd [#allocation5], %s186
      %s189 = sshll.u32 [#allocation4], 4
      %s190 = int_to_ptr.vmem [resolvable:$true] %s189
      %192 = dma.vmem_to_hbm [thread:$0]  %s190, 128, %s3, [#allocation5]
    $region25: #{tpu_custom_call.1} parent=1 // pred_fallthru
      _
    // Predicated region
    $region26: #{tpu_custom_call.1} parent=1 // pred_check
      _
    $region27: #{tpu_custom_call.1} parent=1 // pred_check_branch
      %194 = sbr.rel (0) target = $region29
    $region28: #{tpu_custom_call.1} parent=1 // pred_region
      %s196 = ssub.s32 128, 128
      %197 = vsyncadd [#allocation7], %s196
      %s199 = sshll.u32 [#allocation6], 4
      %s200 = int_to_ptr.vmem [resolvable:$true] %s199
      %202 = dma.vmem_to_hbm [thread:$0]  %s200, 128, %s4, [#allocation7]
    $region29: #{tpu_custom_call.1} parent=1 // pred_fallthru
      _
    // Predicated region
    $region30: #{tpu_custom_call.1} parent=1 // pred_check
      _
    $region31: #{tpu_custom_call.1} parent=1 // pred_check_branch
      %204 = sbr.rel (0) target = $region33
    $region32: #{tpu_custom_call.1} parent=1 // pred_region
      %205 = dma.done [#allocation5], 128
    $region33: #{tpu_custom_call.1} parent=1 // pred_fallthru
      _
    // Predicated region
    $region34: #{tpu_custom_call.1} parent=1 // pred_check
      _
    $region35: #{tpu_custom_call.1} parent=1 // pred_check_branch
      %207 = sbr.rel (0) target = $region37
    $region36: #{tpu_custom_call.1} parent=1 // pred_region
      %208 = dma.done [#allocation7], 128
    $region37: #{tpu_custom_call.1} parent=1 // pred_fallthru
      _
    %209 = vsyncpa [#allocation5], 1
    %210 = vsyncpa [#allocation7], 1

</llo_original>
